<compile_context>
chip_gen: v6e
topology: v6e:2x2x1
jax: 0.10.0
libtpu: 0.0.40
codegen_flags: <defaults>
</compile_context>

<pallas_src>
import functools

import jax
import jax.numpy as jnp
import numpy as np
from jax.experimental import pallas as pl
from jax.experimental.pallas import tpu as pltpu

LANES = 128  # vreg lane width


def _gauss_kernel(thresh_ref, tab_ref, c_ref, rnd_ref, out_ref, *, n):
    """out = c + tab[ind] * rnd, tab[k] = 0.5*max(deltas[k], deltas[k+1]) (clipped)."""
    c = c_ref[...]                                   # (br, 128) f32
    val = jnp.zeros_like(c) + tab_ref[0]             # value for count == 0
    # cs is sorted, so (c > cs[j]) is monotone in j -> the select cascade ends
    # at tab[count] exactly (count = #{j : cs[j] < c}), clip folded into table.
    for j in range(n):                               # N cheap VPU selects
        val = jnp.where(c > thresh_ref[j], tab_ref[j + 1], val)
    out_ref[...] = c + val * rnd_ref[...]


def _tent_kernel(thresh_ref, lo_ref, hi_ref, c_ref, rnd_ref, out_ref, *, n):
    """out = c + where(u<0, deltas[ind], deltas[ind+1]) * sign(u) * (1 - sqrt(|u|))."""
    c = c_ref[...]
    u = rnd_ref[...]
    d_lo = jnp.zeros_like(c) + lo_ref[0]
    d_hi = jnp.zeros_like(c) + hi_ref[0]
    for j in range(n):
        hit = c > thresh_ref[j]
        d_lo = jnp.where(hit, lo_ref[j + 1], d_lo)
        d_hi = jnp.where(hit, hi_ref[j + 1], d_hi)
    delta = jnp.where(u < 0.0, d_lo, d_hi)
    out_ref[...] = c + delta * jnp.sign(u) * (1.0 - jnp.sqrt(jnp.abs(u)))


def dequantize(c, cs, deltas, rnd=None, *, mode="gauss", block_rows=512):
    """c: (B, 1) f32; cs: (N,) sorted f32; deltas: (N+1,) f32; rnd: (B, 1) f32."""
    assert c.ndim == 2 and c.shape[-1] == 1, "Only scalar-valued c tested"
    c = c.astype(jnp.float32)

    if mode == "none":                 # short-circuit: out == c exactly
        return c
    if mode not in ("gauss", "tent"):
        raise RuntimeError("Unknown dequantization filter")
    assert rnd is not None and rnd.shape == c.shape

    B = c.shape[0]
    N = int(cs.shape[0])
    cs = cs.astype(jnp.float32)
    deltas = deltas.astype(jnp.float32)

    # ---- Lane-dense layout: pad B up and view as (rows_padded, 128) f32 slab.
    rows = -(-B // LANES)
    rows8 = ((rows + 7) // 8) * 8                     # sublane multiple
    br = max(8, min(((block_rows + 7) // 8) * 8, rows8))
    rows_padded = -(-rows8 // br) * br
    b_pad = rows_padded * LANES

    def to_slab(x):
        x = x.reshape(-1).astype(jnp.float32)
        x = jnp.pad(x, (0, b_pad - B))                # zero pad (sliced off later)
        return x.reshape(rows_padded, LANES)

    c2 = to_slab(c)
    r2 = to_slab(rnd)

    # ---- Value tables indexed by count = searchsorted_left(cs, c), clip baked in.
    if mode == "gauss":
        dmax = 0.5 * jnp.maximum(deltas[:N], deltas[1:])            # (N,)
        tab = jnp.concatenate([dmax, dmax[N - 1:N]])                # (N+1,) tab[k]=dmax[min(k,N-1)]
        kernel = functools.partial(_gauss_kernel, n=N)
        tables = (cs, tab)
    else:  # tent
        lo = jnp.concatenate([deltas[:N], deltas[N - 1:N]])         # deltas[min(k,N-1)]
        hi = jnp.concatenate([deltas[1:], deltas[N:N + 1]])         # deltas[min(k,N-1)+1]
        kernel = functools.partial(_tent_kernel, n=N)
        tables = (cs, lo, hi)

    data_spec = pl.BlockSpec((br, LANES), lambda i: (i, 0))
    smem_spec = pl.BlockSpec(memory_space=pltpu.MemorySpace.SMEM)   # small scalar tables

    out2 = pl.pallas_call(
        kernel,
        out_shape=jax.ShapeDtypeStruct((rows_padded, LANES), jnp.float32),
        grid=(rows_padded // br,),
        in_specs=[smem_spec] * len(tables) + [data_spec, data_spec],
        out_specs=data_spec,
        compiler_params=pltpu.CompilerParams(dimension_semantics=("parallel",)),
    )(*tables, c2, r2)

    return out2.reshape(-1)[:B].reshape(c.shape)


def _reference(c, cs, deltas, rnd, mode):
    """Pure-JAX reference mirroring the PyTorch semantics."""
    N = cs.shape[0]
    ind = jnp.clip(jnp.searchsorted(cs, c.ravel(), side="left"), 0, N - 1)
    d_lo = deltas[ind]
    d_hi = deltas[ind + 1]
    if mode == "gauss":
        noise = (0.5 * jnp.maximum(d_lo, d_hi)).reshape(c.shape) * rnd
    elif mode == "tent":
        u = rnd
        delta = jnp.where(u.ravel() < 0.0, d_lo, d_hi).reshape(c.shape)
        noise = delta * jnp.sign(u) * (1.0 - jnp.sqrt(jnp.abs(u)))
    else:
        noise = 0.0
    return c + noise


if __name__ == "__main__":
    key = jax.random.PRNGKey(0)
    k_lab, k_base = jax.random.split(key)

    # Deterministic "dataset" labels: N distinct sorted scalar labels.
    N = 16
    raw = jax.random.uniform(k_lab, (N,), dtype=jnp.float32, minval=0.0, maxval=10.0)
    cs = jnp.sort(raw)                                              # (N,)
    deltas = jnp.concatenate(
        [jnp.zeros((1,), jnp.float32), cs[1:] - cs[:-1], jnp.zeros((1,), jnp.float32)]
    )                                                               # (N+1,)

    # Two configs: small batch (single tile) and a larger batch exercising the
    # multi-tile grid + padding path.
    for B, block_rows in ((8, 512), (2000, 8)):
        kc, kg, kt = jax.random.split(jax.random.fold_in(k_base, B), 3)
        c = jax.random.uniform(kc, (B, 1), dtype=jnp.float32, minval=-1.0, maxval=11.0)
        z_gauss = jax.random.normal(kg, (B, 1), dtype=jnp.float32)
        u_tent = -1.0 + 2.0 * jax.random.uniform(kt, (B, 1), dtype=jnp.float32)

        for mode, rnd in (("gauss", z_gauss), ("tent", u_tent), ("none", None)):
            out = dequantize(c, cs, deltas, rnd, mode=mode, block_rows=block_rows)
            out = jax.block_until_ready(out)
            ref = _reference(c, cs, deltas, z_gauss if rnd is None else rnd, mode)
            np.testing.assert_allclose(
                np.asarray(out), np.asarray(ref), rtol=1e-6, atol=1e-6
            )

    print("KERNEL_OK")
</pallas_src>

<mosaic_0001>
module attributes {stable_mosaic.version = 11 : i64} {
  func.func @_gauss_kernel(%arg0: i32, %arg1: memref<16xf32, #tpu.memory_space<smem>>, %arg2: memref<17xf32, #tpu.memory_space<smem>>, %arg3: memref<8x128xf32, #tpu.memory_space<vmem>>, %arg4: memref<8x128xf32, #tpu.memory_space<vmem>>, %arg5: memref<8x128xf32, #tpu.memory_space<vmem>>) attributes {dimension_semantics = [#tpu.dimension_semantics<parallel>], iteration_bounds = array<i64: 1>, scalar_prefetch = 0 : i64, scratch_operands = 0 : i64, tpu.core_type = #tpu.core_type<tc>, window_params = [{transform_indices = @transform_0, window_bounds = array<i64: 16>}, {transform_indices = @transform_1, window_bounds = array<i64: 17>}, {transform_indices = @transform_2, window_bounds = array<i64: 8, 128>}, {transform_indices = @transform_3, window_bounds = array<i64: 8, 128>}, {transform_indices = @transform_4, window_bounds = array<i64: 8, 128>}]} {
    %c0 = arith.constant 0 : index
    %c0_0 = arith.constant 0 : index
    %0 = vector.load %arg3[%c0, %c0_0] : memref<8x128xf32, #tpu.memory_space<vmem>>, vector<8x128xf32>
    %cst = arith.constant 0.000000e+00 : f32
    %1 = vector.broadcast %cst : f32 to vector<8x128xf32>
    %c0_1 = arith.constant 0 : index
    %2 = memref.load %arg2[%c0_1] : memref<17xf32, #tpu.memory_space<smem>>
    %3 = vector.broadcast %2 : f32 to vector<8x128xf32>
    %4 = arith.addf %1, %3 : vector<8x128xf32>
    %c0_2 = arith.constant 0 : index
    %5 = memref.load %arg1[%c0_2] : memref<16xf32, #tpu.memory_space<smem>>
    %6 = vector.broadcast %5 : f32 to vector<8x128xf32>
    %7 = arith.cmpf ogt, %0, %6 : vector<8x128xf32>
    %c1 = arith.constant 1 : index
    %8 = memref.load %arg2[%c1] : memref<17xf32, #tpu.memory_space<smem>>
    %9 = vector.broadcast %8 : f32 to vector<8x128xf32>
    %10 = arith.select %7, %9, %4 : vector<8x128xi1>, vector<8x128xf32>
    %c1_3 = arith.constant 1 : index
    %11 = memref.load %arg1[%c1_3] : memref<16xf32, #tpu.memory_space<smem>>
    %12 = vector.broadcast %11 : f32 to vector<8x128xf32>
    %13 = arith.cmpf ogt, %0, %12 : vector<8x128xf32>
    %c2 = arith.constant 2 : index
    %14 = memref.load %arg2[%c2] : memref<17xf32, #tpu.memory_space<smem>>
    %15 = vector.broadcast %14 : f32 to vector<8x128xf32>
    %16 = arith.select %13, %15, %10 : vector<8x128xi1>, vector<8x128xf32>
    %c2_4 = arith.constant 2 : index
    %17 = memref.load %arg1[%c2_4] : memref<16xf32, #tpu.memory_space<smem>>
    %18 = vector.broadcast %17 : f32 to vector<8x128xf32>
    %19 = arith.cmpf ogt, %0, %18 : vector<8x128xf32>
    %c3 = arith.constant 3 : index
    %20 = memref.load %arg2[%c3] : memref<17xf32, #tpu.memory_space<smem>>
    %21 = vector.broadcast %20 : f32 to vector<8x128xf32>
    %22 = arith.select %19, %21, %16 : vector<8x128xi1>, vector<8x128xf32>
    %c3_5 = arith.constant 3 : index
    %23 = memref.load %arg1[%c3_5] : memref<16xf32, #tpu.memory_space<smem>>
    %24 = vector.broadcast %23 : f32 to vector<8x128xf32>
    %25 = arith.cmpf ogt, %0, %24 : vector<8x128xf32>
    %c4 = arith.constant 4 : index
    %26 = memref.load %arg2[%c4] : memref<17xf32, #tpu.memory_space<smem>>
    %27 = vector.broadcast %26 : f32 to vector<8x128xf32>
    %28 = arith.select %25, %27, %22 : vector<8x128xi1>, vector<8x128xf32>
    %c4_6 = arith.constant 4 : index
    %29 = memref.load %arg1[%c4_6] : memref<16xf32, #tpu.memory_space<smem>>
    %30 = vector.broadcast %29 : f32 to vector<8x128xf32>
    %31 = arith.cmpf ogt, %0, %30 : vector<8x128xf32>
    %c5 = arith.constant 5 : index
    %32 = memref.load %arg2[%c5] : memref<17xf32, #tpu.memory_space<smem>>
    %33 = vector.broadcast %32 : f32 to vector<8x128xf32>
    %34 = arith.select %31, %33, %28 : vector<8x128xi1>, vector<8x128xf32>
    %c5_7 = arith.constant 5 : index
    %35 = memref.load %arg1[%c5_7] : memref<16xf32, #tpu.memory_space<smem>>
    %36 = vector.broadcast %35 : f32 to vector<8x128xf32>
    %37 = arith.cmpf ogt, %0, %36 : vector<8x128xf32>
    %c6 = arith.constant 6 : index
    %38 = memref.load %arg2[%c6] : memref<17xf32, #tpu.memory_space<smem>>
    %39 = vector.broadcast %38 : f32 to vector<8x128xf32>
    %40 = arith.select %37, %39, %34 : vector<8x128xi1>, vector<8x128xf32>
    %c6_8 = arith.constant 6 : index
    %41 = memref.load %arg1[%c6_8] : memref<16xf32, #tpu.memory_space<smem>>
    %42 = vector.broadcast %41 : f32 to vector<8x128xf32>
    %43 = arith.cmpf ogt, %0, %42 : vector<8x128xf32>
    %c7 = arith.constant 7 : index
    %44 = memref.load %arg2[%c7] : memref<17xf32, #tpu.memory_space<smem>>
    %45 = vector.broadcast %44 : f32 to vector<8x128xf32>
    %46 = arith.select %43, %45, %40 : vector<8x128xi1>, vector<8x128xf32>
    %c7_9 = arith.constant 7 : index
    %47 = memref.load %arg1[%c7_9] : memref<16xf32, #tpu.memory_space<smem>>
    %48 = vector.broadcast %47 : f32 to vector<8x128xf32>
    %49 = arith.cmpf ogt, %0, %48 : vector<8x128xf32>
    %c8 = arith.constant 8 : index
    %50 = memref.load %arg2[%c8] : memref<17xf32, #tpu.memory_space<smem>>
    %51 = vector.broadcast %50 : f32 to vector<8x128xf32>
    %52 = arith.select %49, %51, %46 : vector<8x128xi1>, vector<8x128xf32>
    %c8_10 = arith.constant 8 : index
    %53 = memref.load %arg1[%c8_10] : memref<16xf32, #tpu.memory_space<smem>>
    %54 = vector.broadcast %53 : f32 to vector<8x128xf32>
    %55 = arith.cmpf ogt, %0, %54 : vector<8x128xf32>
    %c9 = arith.constant 9 : index
    %56 = memref.load %arg2[%c9] : memref<17xf32, #tpu.memory_space<smem>>
    %57 = vector.broadcast %56 : f32 to vector<8x128xf32>
    %58 = arith.select %55, %57, %52 : vector<8x128xi1>, vector<8x128xf32>
    %c9_11 = arith.constant 9 : index
    %59 = memref.load %arg1[%c9_11] : memref<16xf32, #tpu.memory_space<smem>>
    %60 = vector.broadcast %59 : f32 to vector<8x128xf32>
    %61 = arith.cmpf ogt, %0, %60 : vector<8x128xf32>
    %c10 = arith.constant 10 : index
    %62 = memref.load %arg2[%c10] : memref<17xf32, #tpu.memory_space<smem>>
    %63 = vector.broadcast %62 : f32 to vector<8x128xf32>
    %64 = arith.select %61, %63, %58 : vector<8x128xi1>, vector<8x128xf32>
    %c10_12 = arith.constant 10 : index
    %65 = memref.load %arg1[%c10_12] : memref<16xf32, #tpu.memory_space<smem>>
    %66 = vector.broadcast %65 : f32 to vector<8x128xf32>
    %67 = arith.cmpf ogt, %0, %66 : vector<8x128xf32>
    %c11 = arith.constant 11 : index
    %68 = memref.load %arg2[%c11] : memref<17xf32, #tpu.memory_space<smem>>
    %69 = vector.broadcast %68 : f32 to vector<8x128xf32>
    %70 = arith.select %67, %69, %64 : vector<8x128xi1>, vector<8x128xf32>
    %c11_13 = arith.constant 11 : index
    %71 = memref.load %arg1[%c11_13] : memref<16xf32, #tpu.memory_space<smem>>
    %72 = vector.broadcast %71 : f32 to vector<8x128xf32>
    %73 = arith.cmpf ogt, %0, %72 : vector<8x128xf32>
    %c12 = arith.constant 12 : index
    %74 = memref.load %arg2[%c12] : memref<17xf32, #tpu.memory_space<smem>>
    %75 = vector.broadcast %74 : f32 to vector<8x128xf32>
    %76 = arith.select %73, %75, %70 : vector<8x128xi1>, vector<8x128xf32>
    %c12_14 = arith.constant 12 : index
    %77 = memref.load %arg1[%c12_14] : memref<16xf32, #tpu.memory_space<smem>>
    %78 = vector.broadcast %77 : f32 to vector<8x128xf32>
    %79 = arith.cmpf ogt, %0, %78 : vector<8x128xf32>
    %c13 = arith.constant 13 : index
    %80 = memref.load %arg2[%c13] : memref<17xf32, #tpu.memory_space<smem>>
    %81 = vector.broadcast %80 : f32 to vector<8x128xf32>
    %82 = arith.select %79, %81, %76 : vector<8x128xi1>, vector<8x128xf32>
    %c13_15 = arith.constant 13 : index
    %83 = memref.load %arg1[%c13_15] : memref<16xf32, #tpu.memory_space<smem>>
    %84 = vector.broadcast %83 : f32 to vector<8x128xf32>
    %85 = arith.cmpf ogt, %0, %84 : vector<8x128xf32>
    %c14 = arith.constant 14 : index
    %86 = memref.load %arg2[%c14] : memref<17xf32, #tpu.memory_space<smem>>
    %87 = vector.broadcast %86 : f32 to vector<8x128xf32>
    %88 = arith.select %85, %87, %82 : vector<8x128xi1>, vector<8x128xf32>
    %c14_16 = arith.constant 14 : index
    %89 = memref.load %arg1[%c14_16] : memref<16xf32, #tpu.memory_space<smem>>
    %90 = vector.broadcast %89 : f32 to vector<8x128xf32>
    %91 = arith.cmpf ogt, %0, %90 : vector<8x128xf32>
    %c15 = arith.constant 15 : index
    %92 = memref.load %arg2[%c15] : memref<17xf32, #tpu.memory_space<smem>>
    %93 = vector.broadcast %92 : f32 to vector<8x128xf32>
    %94 = arith.select %91, %93, %88 : vector<8x128xi1>, vector<8x128xf32>
    %c15_17 = arith.constant 15 : index
    %95 = memref.load %arg1[%c15_17] : memref<16xf32, #tpu.memory_space<smem>>
    %96 = vector.broadcast %95 : f32 to vector<8x128xf32>
    %97 = arith.cmpf ogt, %0, %96 : vector<8x128xf32>
    %c16 = arith.constant 16 : index
    %98 = memref.load %arg2[%c16] : memref<17xf32, #tpu.memory_space<smem>>
    %99 = vector.broadcast %98 : f32 to vector<8x128xf32>
    %100 = arith.select %97, %99, %94 : vector<8x128xi1>, vector<8x128xf32>
    %c0_18 = arith.constant 0 : index
    %c0_19 = arith.constant 0 : index
    %101 = vector.load %arg4[%c0_18, %c0_19] : memref<8x128xf32, #tpu.memory_space<vmem>>, vector<8x128xf32>
    %102 = arith.mulf %100, %101 : vector<8x128xf32>
    %103 = arith.addf %0, %102 : vector<8x128xf32>
    %c0_20 = arith.constant 0 : index
    %c0_21 = arith.constant 0 : index
    %104 = vector.load %arg5[%c0_20, %c0_21] : memref<8x128xf32, #tpu.memory_space<vmem>>, vector<8x128xf32>
    tpu.vector_store %arg5[%c0_20, %c0_21], %103 {strides = array<i32>} : memref<8x128xf32, #tpu.memory_space<vmem>>, vector<8x128xf32>,
    return
  }
  func.func @transform_0(%arg0: i32) -> i32 {
    %c0_i32 = arith.constant 0 : i32
    %c0_i32_0 = arith.constant 0 : i32
    return %c0_i32 : i32
  }
  func.func @transform_1(%arg0: i32) -> i32 {
    %c0_i32 = arith.constant 0 : i32
    %c0_i32_0 = arith.constant 0 : i32
    return %c0_i32 : i32
  }
  func.func @transform_2(%arg0: i32) -> (i32, i32) {
    %c0_i32 = arith.constant 0 : i32
    %c0_i32_0 = arith.constant 0 : i32
    return %arg0, %c0_i32 : i32, i32
  }
  func.func @transform_3(%arg0: i32) -> (i32, i32) {
    %c0_i32 = arith.constant 0 : i32
    %c0_i32_0 = arith.constant 0 : i32
    return %arg0, %c0_i32 : i32, i32
  }
  func.func @transform_4(%arg0: i32) -> (i32, i32) {
    %c0_i32 = arith.constant 0 : i32
    %c0_i32_0 = arith.constant 0 : i32
    return %arg0, %c0_i32 : i32, i32
  }
}

</mosaic_0001>

<llo_original>
// kernel: tpu_custom_call.1
$region0: #{tpu_custom_call.1}
  #allocation0 [shape = 'u32[]', space=smem, size = 0x4, offset = 0x4, fixed_abs, tag = 'smem constant byte address 0x4 - core index']
  #allocation1 [shape = 'u32[144,128]{1,0:T(1,128)}', space=vmem, size = 0x12000, scoped, tag = 'internal scratch']
  %s0 = inlined_call_operand.hbm [shape: f32[16], index: 0, kind: input, shape index: {}]
  %s1 = inlined_call_operand.vmem [shape: f32[17], index: 1, kind: input, shape index: {}]
  %s2 = inlined_call_operand.hbm [shape: f32[8,128], index: 2, kind: input, shape index: {}]
  %s3 = inlined_call_operand.hbm [shape: f32[8,128], index: 3, kind: input, shape index: {}]
  %s4 = inlined_call_operand.hbm [shape: f32[8,128], index: 4, kind: output, shape index: {}]
  %s5 = sld [smem:[#allocation0]]
  $region42: #{tpu_custom_call.1} parent=0
    _
  %s7 = ssub.s32 1, %s5
  %s8 = scalar_select 0, %s7, %s5
  $region1: #{tpu_custom_call.1} parent=0
    #allocation2 [shape = 'u8[512]{0}', space=smem, size = 0x200, scoped, tag = 'input window, operand 0, single buffered']
    #allocation3 [shape = 's32[1]{0}', space=sflag, size = 0x4, scoped, tag = 'scoped memory for tpu_custom_call.1']
    #allocation4 [shape = 's32[1]{0}', space=sflag, size = 0x4, scoped, tag = 'scoped memory for tpu_custom_call.1']
    #allocation5 [shape = 's32[1]{0}', space=sflag, size = 0x4, scoped, tag = 'scoped memory for tpu_custom_call.1']
    #allocation6 [shape = 's32[1]{0}', space=sflag, size = 0x4, scoped, tag = 'scoped memory for tpu_custom_call.1']
    #allocation7 [shape = 'u8[512]{0}', space=smem, size = 0x200, scoped, tag = 'input window, operand 1, single buffered']
    #allocation8 [shape = 'u8[4096]{0}', space=vmem, size = 0x1000, scoped, tag = 'input window, operand 2, single buffered']
    #allocation9 [shape = 'u8[4096]{0}', space=vmem, size = 0x1000, scoped, tag = 'input window, operand 3, single buffered']
    #allocation10 [shape = 's32[1]{0}', space=sflag, size = 0x4, scoped, tag = 'scoped memory for tpu_custom_call.1']
    #allocation11 [shape = 'u8[4096]{0}', space=vmem, size = 0x1000, scoped, tag = 'output window, operand 0, single buffered']
    %9 = vsyncpa [#allocation5], 0
    %10 = vsyncpa [#allocation6], 0
    %11 = vsyncpa [#allocation3], 0
    %12 = vsyncpa [#allocation10], 0
    %13 = vsyncpa [#allocation4], 0
    // Predicated region
    $region2: #{tpu_custom_call.1} parent=1 // pred_check
      _
    $region3: #{tpu_custom_call.1} parent=1 // pred_check_branch
      %15 = sbr.rel (0) target = $region5
    $region4: #{tpu_custom_call.1} parent=1 // pred_region
      %s17 = ssub.s32 16, 16
      %18 = vsyncadd [#allocation5], %s17
      %21 = dma.hbm_to_smem %s0, 16, [#allocation2], [#allocation5]
    $region5: #{tpu_custom_call.1} parent=1 // pred_fallthru
      _
    // Predicated region
    $region6: #{tpu_custom_call.1} parent=1 // pred_check
      _
    $region7: #{tpu_custom_call.1} parent=1 // pred_check_branch
      %23 = sbr.rel (0) target = $region9
    $region8: #{tpu_custom_call.1} parent=1 // pred_region
      %s25 = ssub.s32 16, 16
      %26 = vsyncadd [#allocation6], %s25
      %s28 = sshll.u32 %s1, 4
      %s29 = int_to_ptr.vmem [resolvable:$true] %s28
      %31 = dma.vmem_to_smem %s29, 16, [#allocation7], [#allocation6]
    $region9: #{tpu_custom_call.1} parent=1 // pred_fallthru
      _
    // Predicated region
    $region10: #{tpu_custom_call.1} parent=1 // pred_check
      _
    $region11: #{tpu_custom_call.1} parent=1 // pred_check_branch
      %33 = sbr.rel (0) target = $region13
    $region12: #{tpu_custom_call.1} parent=1 // pred_region
      %s35 = ssub.s32 128, 128
      %36 = vsyncadd [#allocation3], %s35
      %s38 = sshll.u32 [#allocation8], 4
      %s39 = int_to_ptr.vmem [resolvable:$true] %s38
      %41 = dma.hbm_to_vmem [thread:$0]  %s2, 128, %s39, [#allocation3]
    $region13: #{tpu_custom_call.1} parent=1 // pred_fallthru
      _
    // Predicated region
    $region14: #{tpu_custom_call.1} parent=1 // pred_check
      _
    $region15: #{tpu_custom_call.1} parent=1 // pred_check_branch
      %43 = sbr.rel (0) target = $region17
    $region16: #{tpu_custom_call.1} parent=1 // pred_region
      %s45 = ssub.s32 128, 128
      %46 = vsyncadd [#allocation10], %s45
      %s48 = sshll.u32 [#allocation9], 4
      %s49 = int_to_ptr.vmem [resolvable:$true] %s48
      %51 = dma.hbm_to_vmem [thread:$0]  %s3, 128, %s49, [#allocation10]
    $region17: #{tpu_custom_call.1} parent=1 // pred_fallthru
      _
    // Predicated region
    $region18: #{tpu_custom_call.1} parent=1 // pred_check
      _
    $region19: #{tpu_custom_call.1} parent=1 // pred_check_branch
      %53 = sbr.rel (0) target = $region21
    $region20: #{tpu_custom_call.1} parent=1 // pred_region
      %54 = dma.done [#allocation5], 16
    $region21: #{tpu_custom_call.1} parent=1 // pred_fallthru
      _
    // Predicated region
    $region22: #{tpu_custom_call.1} parent=1 // pred_check
      _
    $region23: #{tpu_custom_call.1} parent=1 // pred_check_branch
      %56 = sbr.rel (0) target = $region25
    $region24: #{tpu_custom_call.1} parent=1 // pred_region
      %57 = dma.done [#allocation6], 16
    $region25: #{tpu_custom_call.1} parent=1 // pred_fallthru
      _
    // Predicated region
    $region26: #{tpu_custom_call.1} parent=1 // pred_check
      _
    $region27: #{tpu_custom_call.1} parent=1 // pred_check_branch
      %59 = sbr.rel (0) target = $region29
    $region28: #{tpu_custom_call.1} parent=1 // pred_region
      %60 = dma.done [#allocation3], 128
    $region29: #{tpu_custom_call.1} parent=1 // pred_fallthru
      _
    // Predicated region
    $region30: #{tpu_custom_call.1} parent=1 // pred_check
      _
    $region31: #{tpu_custom_call.1} parent=1 // pred_check_branch
      %62 = sbr.rel (0) target = $region33
    $region32: #{tpu_custom_call.1} parent=1 // pred_region
      %63 = dma.done [#allocation10], 128
    $region33: #{tpu_custom_call.1} parent=1 // pred_fallthru
      _
    %64 = sfence
    %v65 = vld [vmem:[#allocation8] sm:$0xff]
    %s66 = sld [smem:[#allocation7]]
    %v67 = vstv %s66
    %v68 = vadd.f32 %v67, 0.0
    %s69 = sld [smem:[#allocation2]]
    %v70 = vstv %s69
    %vm71 = vcmp.gt.f32.partialorder %v65, %v70
    %s72 = sld [smem:[#allocation7 + $0x1]]
    %v73 = vstv %s72
    %v74 = vsel %vm71, %v73, %v68
    %s75 = sld [smem:[#allocation2 + $0x1]]
    %v76 = vstv %s75
    %vm77 = vcmp.gt.f32.partialorder %v65, %v76
    %s78 = sld [smem:[#allocation7 + $0x2]]
    %v79 = vstv %s78
    %v80 = vsel %vm77, %v79, %v74
    %s81 = sld [smem:[#allocation2 + $0x2]]
    %v82 = vstv %s81
    %vm83 = vcmp.gt.f32.partialorder %v65, %v82
    %s84 = sld [smem:[#allocation7 + $0x3]]
    %v85 = vstv %s84
    %v86 = vsel %vm83, %v85, %v80
    %s87 = sld [smem:[#allocation2 + $0x3]]
    %v88 = vstv %s87
    %vm89 = vcmp.gt.f32.partialorder %v65, %v88
    %s90 = sld [smem:[#allocation7 + $0x4]]
    %v91 = vstv %s90
    %v92 = vsel %vm89, %v91, %v86
    %s93 = sld [smem:[#allocation2 + $0x4]]
    %v94 = vstv %s93
    %vm95 = vcmp.gt.f32.partialorder %v65, %v94
    %s96 = sld [smem:[#allocation7 + $0x5]]
    %v97 = vstv %s96
    %v98 = vsel %vm95, %v97, %v92
    %s99 = sld [smem:[#allocation2 + $0x5]]
    %v100 = vstv %s99
    %vm101 = vcmp.gt.f32.partialorder %v65, %v100
    %s102 = sld [smem:[#allocation7 + $0x6]]
    %v103 = vstv %s102
    %v104 = vsel %vm101, %v103, %v98
    %s105 = sld [smem:[#allocation2 + $0x6]]
    %v106 = vstv %s105
    %vm107 = vcmp.gt.f32.partialorder %v65, %v106
    %s108 = sld [smem:[#allocation7 + $0x7]]
    %v109 = vstv %s108
    %v110 = vsel %vm107, %v109, %v104
    %s111 = sld [smem:[#allocation2 + $0x7]]
    %v112 = vstv %s111
    %vm113 = vcmp.gt.f32.partialorder %v65, %v112
    %s114 = sld [smem:[#allocation7 + $0x8]]
    %v115 = vstv %s114
    %v116 = vsel %vm113, %v115, %v110
    %s117 = sld [smem:[#allocation2 + $0x8]]
    %v118 = vstv %s117
    %vm119 = vcmp.gt.f32.partialorder %v65, %v118
    %s120 = sld [smem:[#allocation7 + $0x9]]
    %v121 = vstv %s120
    %v122 = vsel %vm119, %v121, %v116
    %s123 = sld [smem:[#allocation2 + $0x9]]
    %v124 = vstv %s123
    %vm125 = vcmp.gt.f32.partialorder %v65, %v124
    %s126 = sld [smem:[#allocation7 + $0xa]]
    %v127 = vstv %s126
    %v128 = vsel %vm125, %v127, %v122
    %s129 = sld [smem:[#allocation2 + $0xa]]
    %v130 = vstv %s129
    %vm131 = vcmp.gt.f32.partialorder %v65, %v130
    %s132 = sld [smem:[#allocation7 + $0xb]]
    %v133 = vstv %s132
    %v134 = vsel %vm131, %v133, %v128
    %s135 = sld [smem:[#allocation2 + $0xb]]
    %v136 = vstv %s135
    %vm137 = vcmp.gt.f32.partialorder %v65, %v136
    %s138 = sld [smem:[#allocation7 + $0xc]]
    %v139 = vstv %s138
    %v140 = vsel %vm137, %v139, %v134
    %s141 = sld [smem:[#allocation2 + $0xc]]
    %v142 = vstv %s141
    %vm143 = vcmp.gt.f32.partialorder %v65, %v142
    %s144 = sld [smem:[#allocation7 + $0xd]]
    %v145 = vstv %s144
    %v146 = vsel %vm143, %v145, %v140
    %s147 = sld [smem:[#allocation2 + $0xd]]
    %v148 = vstv %s147
    %vm149 = vcmp.gt.f32.partialorder %v65, %v148
    %s150 = sld [smem:[#allocation7 + $0xe]]
    %v151 = vstv %s150
    %v152 = vsel %vm149, %v151, %v146
    %s153 = sld [smem:[#allocation2 + $0xe]]
    %v154 = vstv %s153
    %vm155 = vcmp.gt.f32.partialorder %v65, %v154
    %s156 = sld [smem:[#allocation7 + $0xf]]
    %v157 = vstv %s156
    %v158 = vsel %vm155, %v157, %v152
    %s159 = sld [smem:[#allocation2 + $0xf]]
    %v160 = vstv %s159
    %vm161 = vcmp.gt.f32.partialorder %v65, %v160
    %s162 = sld [smem:[#allocation7 + $0x10]]
    %v163 = vstv %s162
    %v164 = vsel %vm161, %v163, %v158
    %v165 = vld [vmem:[#allocation9] sm:$0xff]
    %v166 = vmul.f32 %v164, %v165
    %v167 = vadd.f32 %v65, %v166
    %168 = vst [vmem:[#allocation11] sm:$0xff] %v167
    // Predicated region
    $region34: #{tpu_custom_call.1} parent=1 // pred_check
      _
    $region35: #{tpu_custom_call.1} parent=1 // pred_check_branch
      %170 = sbr.rel (0) target = $region37
    $region36: #{tpu_custom_call.1} parent=1 // pred_region
      %s172 = ssub.s32 128, 128
      %173 = vsyncadd [#allocation4], %s172
      %s175 = sshll.u32 [#allocation11], 4
      %s176 = int_to_ptr.vmem [resolvable:$true] %s175
      %178 = dma.vmem_to_hbm [thread:$0]  %s176, 128, %s4, [#allocation4]
    $region37: #{tpu_custom_call.1} parent=1 // pred_fallthru
      _
    // Predicated region
    $region38: #{tpu_custom_call.1} parent=1 // pred_check
      _
    $region39: #{tpu_custom_call.1} parent=1 // pred_check_branch
      %180 = sbr.rel (0) target = $region41
    $region40: #{tpu_custom_call.1} parent=1 // pred_region
      %181 = dma.done [#allocation4], 128
    $region41: #{tpu_custom_call.1} parent=1 // pred_fallthru
      _
    %182 = vsyncpa [#allocation3], 1
    %183 = vsyncpa [#allocation10], 1
    %184 = vsyncpa [#allocation4], 1
    %185 = vsyncpa [#allocation5], 1
    %186 = vsyncpa [#allocation6], 1

</llo_original>
